<compile_context>
chip_gen: v7x
topology: tpu7x:2x2x1
jax: 0.10.0
libtpu: 0.0.40
codegen_flags: <defaults>
</compile_context>

<pallas_src>
import math
from functools import partial

import jax
import jax.numpy as jnp
from jax.experimental import pallas as pl
from jax.experimental.pallas import tpu as pltpu


def _round_up(x, m):
    return (x + m - 1) // m * m


def _flash_xattn_kernel(q_ref, kv_ref, o_ref, m_sc, l_sc, acc_sc, *,
                        scale, causal, kv_len, need_kv_mask, tq, tk):
    """Online-softmax flash attention over one (batch*head, q-tile, kv-tile) step.

    Grid = (B*H, Sq_p//tq, Sk_p//tk); last (kv) axis is the reduction ("arbitrary").
    q_ref:  (1, tq, D)      bf16
    kv_ref: (1, 2, tk, D)   bf16 (plane 0 = K, plane 1 = V)
    m_sc/l_sc: (tq, 128) f32 lane-replicated running max / denom
    acc_sc: (tq, D) f32 output accumulator
    """
    kv_idx = pl.program_id(2)
    q_idx = pl.program_id(1)

    @pl.when(kv_idx == 0)
    def _init():
        m_sc[...] = jnp.full_like(m_sc, -jnp.inf)
        l_sc[...] = jnp.zeros_like(l_sc)
        acc_sc[...] = jnp.zeros_like(acc_sc)

    def _compute():
        # Fold softmax scale into q once per tile (tq*D mul, not tq*tk per kv step).
        q = q_ref[0] * scale                 # (tq, D), stays in input dtype (bf16/fp16)
        k = kv_ref[0, 0]                     # (tk, D)
        v = kv_ref[0, 1]                     # (tk, D)

        # q . k^T on the MXU: contract last dims of both -> no explicit transpose.
        s = jax.lax.dot_general(
            q, k, dimension_numbers=(((1,), (1,)), ((), ())),
            preferred_element_type=jnp.float32)           # (tq, tk) f32

        if causal or need_kv_mask:
            k_pos = kv_idx * tk + jax.lax.broadcasted_iota(jnp.int32, (tq, tk), 1)
        if causal:
            # Top-left alignment (matches in-module CrossAttention reference).
            # TODO(synk): newer FlashAttention aligns the causal mask bottom-right
            # when Sq != Sk; switch alignment here if that convention is required.
            q_pos = q_idx * tq + jax.lax.broadcasted_iota(jnp.int32, (tq, tk), 0)
            s = jnp.where(q_pos >= k_pos, s, -jnp.inf)
        if need_kv_mask:
            s = jnp.where(k_pos < kv_len, s, -jnp.inf)    # mask padded keys

        m_prev = m_sc[...]                                # (tq, 128) lane-replicated
        l_prev = l_sc[...]
        m_next = jnp.maximum(m_prev, jnp.max(s, axis=-1, keepdims=True))
        alpha = jnp.exp(m_prev - m_next)                  # (tq, 128)
        p = jnp.exp(s - m_next[:, 0:1])                   # (tq, tk) f32

        l_sc[...] = alpha * l_prev + jnp.sum(p, axis=-1, keepdims=True)
        acc_sc[...] = acc_sc[...] * alpha[:, 0:1] + jnp.dot(
            p.astype(v.dtype), v, preferred_element_type=jnp.float32)
        m_sc[...] = m_next

    if causal:
        # Skip kv tiles that lie entirely above the diagonal for this q tile.
        pl.when(kv_idx * tk < (q_idx + 1) * tq)(_compute)
    else:
        _compute()

    @pl.when(kv_idx == pl.num_programs(2) - 1)
    def _finalize():
        l_inv = pl.reciprocal(l_sc[...], approx=True)     # EUP slot, ~free
        o_ref[0] = (acc_sc[...] * l_inv[:, 0:1]).astype(o_ref.dtype)


def _flash_xattn_bhsd(q, kv, *, scale, causal, kv_len, tq, tk):
    """q: (BH, Sq_p, D), kv: (BH, 2, Sk_p, D) -> (BH, Sq_p, D)."""
    BH, Sq, D = q.shape
    Sk = kv.shape[2]
    assert Sq % tq == 0 and Sk % tk == 0
    need_kv_mask = (Sk != kv_len)

    kernel = partial(_flash_xattn_kernel, scale=scale, causal=causal,
                     kv_len=kv_len, need_kv_mask=need_kv_mask, tq=tq, tk=tk)

    return pl.pallas_call(
        kernel,
        out_shape=jax.ShapeDtypeStruct((BH, Sq, D), q.dtype),
        grid_spec=pltpu.PrefetchScalarGridSpec(
            num_scalar_prefetch=0,
            grid=(BH, Sq // tq, Sk // tk),
            in_specs=[
                pl.BlockSpec((1, tq, D), lambda b, i, j: (b, i, 0)),       # q tile
                pl.BlockSpec((1, 2, tk, D), lambda b, i, j: (b, 0, j, 0)),  # packed K/V tile
            ],
            out_specs=pl.BlockSpec((1, tq, D), lambda b, i, j: (b, i, 0)),
            scratch_shapes=[
                pltpu.VMEM((tq, 128), jnp.float32),   # running max m (lane-replicated)
                pltpu.VMEM((tq, 128), jnp.float32),   # running denom l (lane-replicated)
                pltpu.VMEM((tq, D), jnp.float32),     # output accumulator
            ],
        ),
        compiler_params=pltpu.CompilerParams(
            dimension_semantics=("parallel", "parallel", "arbitrary")),
    )(q, kv)


def flash_cross_attention(q, kv, *, causal=False, softmax_scale=None, tq=256, tk=512):
    """Pallas equivalent of FlashCrossAttention.forward (padded path, eval, dropout=0).

    q:  (B, Sq, H, D)    bf16/fp16
    kv: (B, Sk, 2, H, D) same dtype
    returns (B, Sq, H, D)
    """
    assert q.dtype in (jnp.float16, jnp.bfloat16)
    B, Sq, H, D = q.shape
    assert kv.shape[0] == B and kv.shape[2] == 2 and kv.shape[3] == H and kv.shape[4] == D
    Sk = kv.shape[1]
    scale = softmax_scale if softmax_scale is not None else 1.0 / math.sqrt(D)

    # Layout glue: head-major slabs. K/V stay packed so kv is transposed exactly once.
    #   q:  (B, Sq, H, D)    -> (B*H, Sq, D)
    #   kv: (B, Sk, 2, H, D) -> (B*H, 2, Sk, D)
    q_bh = jnp.transpose(q, (0, 2, 1, 3)).reshape(B * H, Sq, D)
    kv_bh = jnp.transpose(kv, (0, 3, 2, 1, 4)).reshape(B * H, 2, Sk, D)

    # Tile sizes: MXU-scale by default, shrunk (and sequences zero-padded) for small S.
    tq_e = min(_round_up(tq, 8), _round_up(Sq, 8))
    tk_e = min(_round_up(tk, 8), _round_up(Sk, 8))
    Sq_p = _round_up(Sq, tq_e)
    Sk_p = _round_up(Sk, tk_e)
    if Sq_p != Sq:
        q_bh = jnp.pad(q_bh, ((0, 0), (0, Sq_p - Sq), (0, 0)))
    if Sk_p != Sk:
        kv_bh = jnp.pad(kv_bh, ((0, 0), (0, 0), (0, Sk_p - Sk), (0, 0)))

    o_bh = _flash_xattn_bhsd(q_bh, kv_bh, scale=scale, causal=causal,
                             kv_len=Sk, tq=tq_e, tk=tk_e)
    if Sq_p != Sq:
        o_bh = o_bh[:, :Sq]

    return jnp.transpose(o_bh.reshape(B, H, Sq, D), (0, 2, 1, 3))   # (B, Sq, H, D)

# TODO(synk): varlen (cu_seqlens) path and attention dropout are not implemented
# (dropout_p=0 / padded path only), matching the module's eval-mode behavior.
# TODO(synk): the surrounding ParallelMHADejavu pieces (Wqkv / out_proj parallel
# linears, all_reduce, kv-cache update, CUDA-stream MLP top-k side channel) are
# framework glue outside this attention kernel.


def _reference_attention(q, kv, *, causal=False, softmax_scale=None):
    """Pure-JAX fp32 reference for correctness checking."""
    B, Sq, H, D = q.shape
    Sk = kv.shape[1]
    scale = softmax_scale if softmax_scale is not None else 1.0 / math.sqrt(D)
    qf = q.astype(jnp.float32)
    kf = kv[:, :, 0].astype(jnp.float32)
    vf = kv[:, :, 1].astype(jnp.float32)
    s = jnp.einsum("bqhd,bkhd->bhqk", qf, kf) * scale
    if causal:
        mask = jnp.tril(jnp.ones((Sq, Sk), dtype=bool))
        s = jnp.where(mask[None, None], s, -jnp.inf)
    p = jax.nn.softmax(s, axis=-1)
    o = jnp.einsum("bhqk,bkhd->bqhd", p, vf)
    return o.astype(q.dtype)


if __name__ == "__main__":
    configs = [
        dict(B=2, Sq=8,   Sk=8,   H=4, D=32, causal=False),   # small, module-style shapes
        dict(B=1, Sq=100, Sk=100, H=2, D=64, causal=False),   # exercises pad + key masking
        dict(B=1, Sq=128, Sk=128, H=2, D=64, causal=True),    # exercises causal skip/mask
    ]
    key = jax.random.PRNGKey(0)
    for cfg in configs:
        B, Sq, Sk, H, D = cfg["B"], cfg["Sq"], cfg["Sk"], cfg["H"], cfg["D"]
        key, kq, kkv = jax.random.split(key, 3)
        q = jax.random.normal(kq, (B, Sq, H, D), dtype=jnp.float32).astype(jnp.bfloat16)
        kv = jax.random.normal(kkv, (B, Sk, 2, H, D), dtype=jnp.float32).astype(jnp.bfloat16)

        out = flash_cross_attention(q, kv, causal=cfg["causal"], softmax_scale=None)
        out = jax.block_until_ready(out)

        ref = _reference_attention(q, kv, causal=cfg["causal"], softmax_scale=None)
        err = jnp.max(jnp.abs(out.astype(jnp.float32) - ref.astype(jnp.float32)))
        assert out.shape == (B, Sq, H, D) and out.dtype == q.dtype
        assert float(err) < 6e-2, f"cfg={cfg}: max abs error {float(err)}"

    print("KERNEL_OK")
</pallas_src>

<mosaic_0001>
module attributes {stable_mosaic.version = 11 : i64} {
  func.func @_flash_xattn_kernel(%arg0: i32, %arg1: i32, %arg2: i32, %arg3: memref<1x8x32xbf16, #tpu.memory_space<vmem>>, %arg4: memref<1x2x8x32xbf16, #tpu.memory_space<vmem>>, %arg5: memref<1x8x32xbf16, #tpu.memory_space<vmem>>, %arg6: memref<8x128xf32, #tpu.memory_space<vmem>>, %arg7: memref<8x128xf32, #tpu.memory_space<vmem>>, %arg8: memref<8x32xf32, #tpu.memory_space<vmem>>) attributes {dimension_semantics = [#tpu.dimension_semantics<parallel>, #tpu.dimension_semantics<parallel>, #tpu.dimension_semantics<arbitrary>], iteration_bounds = array<i64: 8, 1, 1>, scalar_prefetch = 0 : i64, scratch_operands = 3 : i64, tpu.core_type = #tpu.core_type<tc>, window_params = [{transform_indices = @transform_0, window_bounds = array<i64: 1, 8, 32>}, {transform_indices = @transform_1, window_bounds = array<i64: 1, 2, 8, 32>}, {transform_indices = @transform_2, window_bounds = array<i64: 1, 8, 32>}]} {
    %c0_i32 = arith.constant 0 : i32
    %0 = arith.cmpi eq, %arg2, %c0_i32 : i32
    %1 = arith.extui %0 : i1 to i32
    %c0_i32_0 = arith.constant 0 : i32
    %2 = arith.cmpi ne, %1, %c0_i32_0 : i32
    scf.if %2 {
      %cst_28 = arith.constant 0xFF800000 : f32
      %42 = vector.broadcast %cst_28 : f32 to vector<8x128xf32>
      %c0_29 = arith.constant 0 : index
      %c0_30 = arith.constant 0 : index
      %43 = vector.load %arg6[%c0_29, %c0_30] : memref<8x128xf32, #tpu.memory_space<vmem>>, vector<8x128xf32>
      tpu.vector_store %arg6[%c0_29, %c0_30], %42 {strides = array<i32>} : memref<8x128xf32, #tpu.memory_space<vmem>>, vector<8x128xf32>,
      %cst_31 = arith.constant 0.000000e+00 : f32
      %44 = vector.broadcast %cst_31 : f32 to vector<8x128xf32>
      %c0_32 = arith.constant 0 : index
      %c0_33 = arith.constant 0 : index
      %45 = vector.load %arg7[%c0_32, %c0_33] : memref<8x128xf32, #tpu.memory_space<vmem>>, vector<8x128xf32>
      tpu.vector_store %arg7[%c0_32, %c0_33], %44 {strides = array<i32>} : memref<8x128xf32, #tpu.memory_space<vmem>>, vector<8x128xf32>,
      %cst_34 = arith.constant 0.000000e+00 : f32
      %46 = vector.broadcast %cst_34 : f32 to vector<8x32xf32>
      %c0_35 = arith.constant 0 : index
      %c0_36 = arith.constant 0 : index
      %47 = vector.load %arg8[%c0_35, %c0_36] : memref<8x32xf32, #tpu.memory_space<vmem>>, vector<8x32xf32>
      tpu.vector_store %arg8[%c0_35, %c0_36], %46 {strides = array<i32>} : memref<8x32xf32, #tpu.memory_space<vmem>>, vector<8x32xf32>,
    } else {
    }
    %c0 = arith.constant 0 : index
    %c0_1 = arith.constant 0 : index
    %c0_2 = arith.constant 0 : index
    %3 = vector.load %arg3[%c0, %c0_1, %c0_2] : memref<1x8x32xbf16, #tpu.memory_space<vmem>>, vector<1x8x32xbf16>
    %4 = vector.shape_cast %3 : vector<1x8x32xbf16> to vector<8x32xbf16>
    %cst = arith.constant 1.767580e-01 : bf16
    %5 = vector.broadcast %cst : bf16 to vector<8x32xbf16>
    %6 = arith.mulf %4, %5 : vector<8x32xbf16>
    %c0_3 = arith.constant 0 : index
    %c0_4 = arith.constant 0 : index
    %c0_5 = arith.constant 0 : index
    %c0_6 = arith.constant 0 : index
    %7 = vector.load %arg4[%c0_3, %c0_4, %c0_5, %c0_6] : memref<1x2x8x32xbf16, #tpu.memory_space<vmem>>, vector<1x1x8x32xbf16>
    %8 = vector.shape_cast %7 : vector<1x1x8x32xbf16> to vector<8x32xbf16>
    %c0_7 = arith.constant 0 : index
    %c1 = arith.constant 1 : index
    %c0_8 = arith.constant 0 : index
    %c0_9 = arith.constant 0 : index
    %9 = vector.load %arg4[%c0_7, %c1, %c0_8, %c0_9] : memref<1x2x8x32xbf16, #tpu.memory_space<vmem>>, vector<1x1x8x32xbf16>
    %10 = vector.shape_cast %9 : vector<1x1x8x32xbf16> to vector<8x32xbf16>
    %cst_10 = arith.constant dense<0.000000e+00> : vector<8x8xf32>
    %11 = tpu.matmul %6, %8, %cst_10 {dimension_numbers = #tpu.dot_dimension_numbers<[1], [1], [0], [0], [0, 0, 1, 0], [], []>} : vector<8x32xbf16>, vector<8x32xbf16>, vector<8x8xf32> -> vector<8x8xf32>
    %c0_11 = arith.constant 0 : index
    %c0_12 = arith.constant 0 : index
    %12 = vector.load %arg6[%c0_11, %c0_12] : memref<8x128xf32, #tpu.memory_space<vmem>>, vector<8x128xf32>
    %c0_13 = arith.constant 0 : index
    %c0_14 = arith.constant 0 : index
    %13 = vector.load %arg7[%c0_13, %c0_14] : memref<8x128xf32, #tpu.memory_space<vmem>>, vector<8x128xf32>
    %cst_15 = arith.constant dense<0xFF800000> : vector<8xf32>
    %14 = vector.multi_reduction <maximumf>, %11, %cst_15 [1] : vector<8x8xf32> to vector<8xf32>
    %15 = vector.shape_cast %14 : vector<8xf32> to vector<8x1xf32>
    %16 = vector.broadcast %15 : vector<8x1xf32> to vector<8x128xf32>
    %17 = arith.maximumf %12, %16 : vector<8x128xf32>
    %18 = arith.subf %12, %17 : vector<8x128xf32>
    %19 = math.exp %18 : vector<8x128xf32>
    %20 = vector.extract_strided_slice %17 {offsets = [0, 0], sizes = [8, 1], strides = [1, 1]} : vector<8x128xf32> to vector<8x1xf32>
    %21 = vector.broadcast %20 : vector<8x1xf32> to vector<8x8xf32>
    %22 = arith.subf %11, %21 : vector<8x8xf32>
    %23 = math.exp %22 : vector<8x8xf32>
    %24 = arith.mulf %19, %13 : vector<8x128xf32>
    %cst_16 = arith.constant dense<0.000000e+00> : vector<8xf32>
    %25 = vector.multi_reduction <add>, %23, %cst_16 [1] : vector<8x8xf32> to vector<8xf32>
    %26 = vector.shape_cast %25 : vector<8xf32> to vector<8x1xf32>
    %27 = vector.broadcast %26 : vector<8x1xf32> to vector<8x128xf32>
    %28 = arith.addf %24, %27 : vector<8x128xf32>
    %c0_17 = arith.constant 0 : index
    %c0_18 = arith.constant 0 : index
    %29 = vector.load %arg7[%c0_17, %c0_18] : memref<8x128xf32, #tpu.memory_space<vmem>>, vector<8x128xf32>
    tpu.vector_store %arg7[%c0_17, %c0_18], %28 {strides = array<i32>} : memref<8x128xf32, #tpu.memory_space<vmem>>, vector<8x128xf32>,
    %c0_19 = arith.constant 0 : index
    %c0_20 = arith.constant 0 : index
    %30 = vector.load %arg8[%c0_19, %c0_20] : memref<8x32xf32, #tpu.memory_space<vmem>>, vector<8x32xf32>
    %31 = vector.extract_strided_slice %19 {offsets = [0, 0], sizes = [8, 1], strides = [1, 1]} : vector<8x128xf32> to vector<8x1xf32>
    %32 = vector.broadcast %31 : vector<8x1xf32> to vector<8x32xf32>
    %33 = arith.mulf %30, %32 : vector<8x32xf32>
    %34 = arith.truncf %23 : vector<8x8xf32> to vector<8x8xbf16>
    %cst_21 = arith.constant dense<0.000000e+00> : vector<8x32xf32>
    %35 = tpu.matmul %34, %10, %cst_21 {dimension_numbers = #tpu.dot_dimension_numbers<[1], [0], [0], [1], [0, 0, 1, 1], [], []>} : vector<8x8xbf16>, vector<8x32xbf16>, vector<8x32xf32> -> vector<8x32xf32>
    %36 = arith.addf %33, %35 : vector<8x32xf32>
    %c0_22 = arith.constant 0 : index
    %c0_23 = arith.constant 0 : index
    %37 = vector.load %arg8[%c0_22, %c0_23] : memref<8x32xf32, #tpu.memory_space<vmem>>, vector<8x32xf32>
    tpu.vector_store %arg8[%c0_22, %c0_23], %36 {strides = array<i32>} : memref<8x32xf32, #tpu.memory_space<vmem>>, vector<8x32xf32>,
    %c0_24 = arith.constant 0 : index
    %c0_25 = arith.constant 0 : index
    %38 = vector.load %arg6[%c0_24, %c0_25] : memref<8x128xf32, #tpu.memory_space<vmem>>, vector<8x128xf32>
    tpu.vector_store %arg6[%c0_24, %c0_25], %17 {strides = array<i32>} : memref<8x128xf32, #tpu.memory_space<vmem>>, vector<8x128xf32>,
    %c0_i32_26 = arith.constant 0 : i32
    %39 = arith.cmpi eq, %arg2, %c0_i32_26 : i32
    %40 = arith.extui %39 : i1 to i32
    %c0_i32_27 = arith.constant 0 : i32
    %41 = arith.cmpi ne, %40, %c0_i32_27 : i32
    scf.if %41 {
      %c0_28 = arith.constant 0 : index
      %c0_29 = arith.constant 0 : index
      %42 = vector.load %arg7[%c0_28, %c0_29] : memref<8x128xf32, #tpu.memory_space<vmem>>, vector<8x128xf32>
      %43 = tpu.reciprocal %42 {approx = true} : vector<8x128xf32> -> vector<8x128xf32>
      %c0_30 = arith.constant 0 : index
      %c0_31 = arith.constant 0 : index
      %44 = vector.load %arg8[%c0_30, %c0_31] : memref<8x32xf32, #tpu.memory_space<vmem>>, vector<8x32xf32>
      %45 = vector.extract_strided_slice %43 {offsets = [0, 0], sizes = [8, 1], strides = [1, 1]} : vector<8x128xf32> to vector<8x1xf32>
      %46 = vector.broadcast %45 : vector<8x1xf32> to vector<8x32xf32>
      %47 = arith.mulf %44, %46 : vector<8x32xf32>
      %48 = arith.truncf %47 : vector<8x32xf32> to vector<8x32xbf16>
      %c0_32 = arith.constant 0 : index
      %c0_33 = arith.constant 0 : index
      %c0_34 = arith.constant 0 : index
      %49 = vector.load %arg5[%c0_32, %c0_33, %c0_34] : memref<1x8x32xbf16, #tpu.memory_space<vmem>>, vector<1x8x32xbf16>
      %50 = vector.shape_cast %49 : vector<1x8x32xbf16> to vector<8x32xbf16>
      %51 = vector.shape_cast %48 : vector<8x32xbf16> to vector<1x8x32xbf16>
      tpu.vector_store %arg5[%c0_32, %c0_33, %c0_34], %51 {strides = array<i32>} : memref<1x8x32xbf16, #tpu.memory_space<vmem>>, vector<1x8x32xbf16>,
    } else {
    }
    return
  }
  func.func @transform_0(%arg0: i32, %arg1: i32, %arg2: i32) -> (i32, i32, i32) {
    %c0_i32 = arith.constant 0 : i32
    %c0_i32_0 = arith.constant 0 : i32
    return %arg0, %arg1, %c0_i32 : i32, i32, i32
  }
  func.func @transform_1(%arg0: i32, %arg1: i32, %arg2: i32) -> (i32, i32, i32, i32) {
    %c0_i32 = arith.constant 0 : i32
    %c0_i32_0 = arith.constant 0 : i32
    %c0_i32_1 = arith.constant 0 : i32
    return %arg0, %c0_i32, %arg2, %c0_i32_0 : i32, i32, i32, i32
  }
  func.func @transform_2(%arg0: i32, %arg1: i32, %arg2: i32) -> (i32, i32, i32) {
    %c0_i32 = arith.constant 0 : i32
    %c0_i32_0 = arith.constant 0 : i32
    return %arg0, %arg1, %c0_i32 : i32, i32, i32
  }
}

</mosaic_0001>

<llo_original>
// kernel: tpu_custom_call.1
$region0: #{tpu_custom_call.1}
  #allocation0 [shape = 'u32[]', space=smem, size = 0x4, offset = 0x4, fixed_abs, tag = 'smem constant byte address 0x4 - core index']
  #allocation1 [shape = 'u32[144,128]{1,0:T(1,128)}', space=vmem, size = 0x12000, scoped, tag = 'internal scratch']
  #allocation2 [shape = 'f32[8,128]{1,0:T(8,128)}', space=vmem, size = 0x1000, scoped, tag = 'scratch operand']
  #allocation3 [shape = 'f32[8,128]{1,0:T(8,128)}', space=vmem, size = 0x1000, scoped, tag = 'scratch operand']
  #allocation4 [shape = 'f32[8,32]{1,0:T(8,128)}', space=vmem, size = 0x1000, scoped, tag = 'scratch operand']
  %s0 = inlined_call_operand.hbm [shape: bf16[8,8,32], index: 0, kind: input, shape index: {}]
  %s1 = inlined_call_operand.hbm [shape: bf16[8,2,8,32], index: 1, kind: input, shape index: {}]
  %s2 = inlined_call_operand.hbm [shape: bf16[8,8,32], index: 2, kind: output, shape index: {}]
  %s3 = sld [smem:[#allocation0]]
  $region57: #{tpu_custom_call.1} parent=0
    _
  %s5 = ssub.s32 1, %s3
  %s6 = scalar_select 0, %s5, %s3
  $region1: #{tpu_custom_call.1} parent=0
    #allocation5 [shape = 'u8[4096]{0}', space=vmem, size = 0x1000, scoped, tag = 'input window, operand 0']
    #allocation6 [shape = 's32[2]{0}', space=sflag, size = 0x8, scoped, tag = 'scoped memory for tpu_custom_call.1']
    #allocation7 [shape = 's32[2]{0}', space=sflag, size = 0x8, scoped, tag = 'scoped memory for tpu_custom_call.1']
    #allocation8 [shape = 'u8[8192]{0}', space=vmem, size = 0x2000, scoped, tag = 'input window, operand 1']
    #allocation9 [shape = 's32[2]{0}', space=sflag, size = 0x8, scoped, tag = 'scoped memory for tpu_custom_call.1']
    #allocation10 [shape = 'u8[4096]{0}', space=vmem, size = 0x1000, scoped, tag = 'output window, operand 0']
    %7 = vsyncpa [#allocation6], 0
    %s8 = scalar_lea.sflag [#allocation6], 1
    %9 = vsyncpa %s8, 0
    %10 = vsyncpa [#allocation9], 0
    %s11 = scalar_lea.sflag [#allocation9], 1
    %12 = vsyncpa %s11, 0
    %13 = vsyncpa [#allocation7], 0
    %s14 = scalar_lea.sflag [#allocation7], 1
    %15 = vsyncpa %s14, 0
    loop: start=0, step=1, limit=10
    $region2: #{tpu_custom_call.1} parent=1 // loop_pre_header
      _
    $region3: #{tpu_custom_call.1} parent=1 // loop_header
      %s17 = sphi 0, %s21
      %p18 = scmp.ge.s32.totalorder %s17, 10
      %s24 = sphi 0, %s43
      %s25 = sphi 0, %s39
      %s26 = sphi 0, %s35
      %s27 = sphi 0, %s24
      %s28 = sphi 0, %s25
      %s29 = sphi 0, %s26
      %s30 = sphi 0, %s27
      %s31 = sphi 0, %s28
      %s32 = sphi 0, %s29
      %s48 = sphi 0, %s50
      %s51 = sphi 0, %s48
      %s52 = sphi 0, %s51
      %s68 = sphi 0, %s52
      %s76 = sphi 0, %s78
      %s79 = sphi 0, %s76
      %s80 = sphi 0, %s79
      %s96 = sphi 0, %s80
      %s104 = sphi 0, %s106
      %s107 = sphi 0, %s104
      %s108 = sphi 0, %s107
      %s124 = sphi 0, %s108
    $region4: #{tpu_custom_call.1} parent=1 // loop_header_branch
      %20 = sbr.rel (%p18) target = $region8
    $region5: #{tpu_custom_call.1} parent=1 // loop_body
      %s22 = ssub.s32 %s17, 1
      %s23 = ssub.s32 %s17, 2
      %s33 = sadd.s32 1, %s26
      %p34 = scmp.ge.s32.totalorder %s33, 1
      %s35 = scalar_select %p34, 0, %s33
      %s36 = sadd.s32 1, %s25
      %s37 = scalar_select %p34, %s36, %s25
      %p38 = scmp.ge.s32.totalorder %s37, 1
      %s39 = scalar_select %p38, 0, %s37
      %s40 = sadd.s32 1, %s24
      %s41 = scalar_select %p38, %s40, %s24
      %p42 = scmp.ge.s32.totalorder %s41, 8
      %s43 = scalar_select %p42, 0, %s41
      %s44 = ssub.s32 %s24, %s43
      %s45 = ssub.s32 %s25, %s39
      %s46 = sor.u32 %s44, %s45
      %p47 = scmp.eq.s32.totalorder %s46, 0
      %s49 = sadd.s32 %s48, 1
      %s50 = scalar_select %p47, %s48, %s49
      %p53 = pneg %p47
      %p54 = scmp.eq.s32.totalorder %s17, 7
      %p55 = por %p53, %p54
      %p56 = scmp.ne.s32.totalorder %s48, %s51
      %p57 = scmp.eq.s32.totalorder %s17, 0
      %p58 = por %p56, %p57
      %p59 = scmp.ne.s32.totalorder %s48, %s51
      %p60 = scmp.eq.s32.totalorder %s22, 7
      %p61 = por %p59, %p60
      %p62 = scmp.ne.s32.totalorder %s51, %s52
      %p63 = scmp.eq.s32.totalorder %s22, 0
      %p64 = por %p62, %p63
      %p65 = scmp.ne.s32.totalorder %s51, %s52
      %p66 = scmp.eq.s32.totalorder %s23, 7
      %p67 = por %p65, %p66
      %p69 = scmp.ne.s32.totalorder %s52, %s68
      %p70 = scmp.eq.s32.totalorder %s23, 0
      %p71 = por %p69, %p70
      %s72 = ssub.s32 %s24, %s43
      %s73 = ssub.s32 %s26, %s35
      %s74 = sor.u32 %s72, %s73
      %p75 = scmp.eq.s32.totalorder %s74, 0
      %s77 = sadd.s32 %s76, 1
      %s78 = scalar_select %p75, %s76, %s77
      %p81 = pneg %p75
      %p82 = scmp.eq.s32.totalorder %s17, 7
      %p83 = por %p81, %p82
      %p84 = scmp.ne.s32.totalorder %s76, %s79
      %p85 = scmp.eq.s32.totalorder %s17, 0
      %p86 = por %p84, %p85
      %p87 = scmp.ne.s32.totalorder %s76, %s79
      %p88 = scmp.eq.s32.totalorder %s22, 7
      %p89 = por %p87, %p88
      %p90 = scmp.ne.s32.totalorder %s79, %s80
      %p91 = scmp.eq.s32.totalorder %s22, 0
      %p92 = por %p90, %p91
      %p93 = scmp.ne.s32.totalorder %s79, %s80
      %p94 = scmp.eq.s32.totalorder %s23, 7
      %p95 = por %p93, %p94
      %p97 = scmp.ne.s32.totalorder %s80, %s96
      %p98 = scmp.eq.s32.totalorder %s23, 0
      %p99 = por %p97, %p98
      %s100 = ssub.s32 %s24, %s43
      %s101 = ssub.s32 %s25, %s39
      %s102 = sor.u32 %s100, %s101
      %p103 = scmp.eq.s32.totalorder %s102, 0
      %s105 = sadd.s32 %s104, 1
      %s106 = scalar_select %p103, %s104, %s105
      %p109 = pneg %p103
      %p110 = scmp.eq.s32.totalorder %s17, 7
      %p111 = por %p109, %p110
      %p112 = scmp.ne.s32.totalorder %s104, %s107
      %p113 = scmp.eq.s32.totalorder %s17, 0
      %p114 = por %p112, %p113
      %p115 = scmp.ne.s32.totalorder %s104, %s107
      %p116 = scmp.eq.s32.totalorder %s22, 7
      %p117 = por %p115, %p116
      %p118 = scmp.ne.s32.totalorder %s107, %s108
      %p119 = scmp.eq.s32.totalorder %s22, 0
      %p120 = por %p118, %p119
      %p121 = scmp.ne.s32.totalorder %s107, %s108
      %p122 = scmp.eq.s32.totalorder %s23, 7
      %p123 = por %p121, %p122
      %p125 = scmp.ne.s32.totalorder %s108, %s124
      %p126 = scmp.eq.s32.totalorder %s23, 0
      %p127 = por %p125, %p126
      %p128 = scmp.le.s32.totalorder 1, %s17
      %p129 = scmp.lt.s32.totalorder %s17, 9
      %p130 = pnand %p128, %p129
      %p131 = pneg %p130
      // Predicated region
      $region9: #{tpu_custom_call.1} parent=5 // pred_check
        _
      $region10: #{tpu_custom_call.1} parent=5 // pred_check_branch
        %133 = sbr.rel (%p130) target = $region12
      $region11: #{tpu_custom_call.1} parent=5 // pred_region
        %s134 = ssub.s32 %s17, 1
      $region12: #{tpu_custom_call.1} parent=5 // pred_fallthru
        _
      %p135 = scmp.lt.s32.totalorder %s17, 8
      // Predicated region
      $region13: #{tpu_custom_call.1} parent=5 // pred_check
        %p136 = pneg %p135
      $region14: #{tpu_custom_call.1} parent=5 // pred_check_branch
        %138 = sbr.rel (%p136) target = $region16
      $region15: #{tpu_custom_call.1} parent=5 // pred_region
        // Predicated region
        $region17: #{tpu_custom_call.1} parent=15 // pred_check
          %p139 = pneg %p58
        $region18: #{tpu_custom_call.1} parent=15 // pred_check_branch
          %141 = sbr.rel (%p139) target = $region20
        $region19: #{tpu_custom_call.1} parent=15 // pred_region
          %s142 = sand.u32 %s48, 1
          %s143 = scalar_lea.sflag [#allocation6], %s142
          %s144 = sand.u32 %s48, 1
          %s145 = smul.addr %s144, 4
          %s146 = scalar_lea.vmem [#allocation5], %s145
          %s148 = ssub.s32 64, 64
          %149 = vsyncadd %s143, %s148
          %s150 = sadd.s32 %s25, %s24
          %s151 = smul.addr %s150, 64
          %s152 = scalar_lea.hbm %s0, %s151
          %s154 = sshll.u32 %s146, 4
          %s155 = int_to_ptr.vmem [resolvable:$true] %s154
          %157 = dma.hbm_to_vmem [thread:$0]  %s152, 64, %s155, %s143
        $region20: #{tpu_custom_call.1} parent=15 // pred_fallthru
          _
        // Predicated region
        $region21: #{tpu_custom_call.1} parent=15 // pred_check
          %p158 = pneg %p86
        $region22: #{tpu_custom_call.1} parent=15 // pred_check_branch
          %160 = sbr.rel (%p158) target = $region24
        $region23: #{tpu_custom_call.1} parent=15 // pred_region
          %s161 = sand.u32 %s76, 1
          %s162 = scalar_lea.sflag [#allocation9], %s161
          %s163 = sand.u32 %s76, 1
          %s164 = smul.addr %s163, 8
          %s165 = scalar_lea.vmem [#allocation8], %s164
          %s167 = ssub.s32 128, 128
          %168 = vsyncadd %s162, %s167
          %s169 = smul.addr %s24, 2
          %s170 = sadd.s32 %s26, %s169
          %s171 = smul.addr %s170, 64
          %s172 = scalar_lea.hbm %s1, %s171
          %s173 = sshll.u32 %s165, 4
          %s174 = int_to_ptr.vmem [resolvable:$true] %s173
          %179 = dma.hbm_to_vmem [thread:$0]  %s172, 128, %s174, %s162, 64, 64, 4
        $region24: #{tpu_custom_call.1} parent=15 // pred_fallthru
          _
      $region16: #{tpu_custom_call.1} parent=5 // pred_fallthru
        _
      %p180 = scmp.le.s32.totalorder 1, %s17
      %p181 = scmp.lt.s32.totalorder %s17, 9
      %p182 = pnand %p180, %p181
      %p183 = pneg %p182
      // Predicated region
      $region25: #{tpu_custom_call.1} parent=5 // pred_check
        _
      $region26: #{tpu_custom_call.1} parent=5 // pred_check_branch
        %185 = sbr.rel (%p182) target = $region28
      $region27: #{tpu_custom_call.1} parent=5 // pred_region
        %s186 = ssub.s32 %s17, 1
        %s187 = sand.u32 %s51, 1
        %s188 = scalar_lea.sflag [#allocation6], %s187
        %s189 = sand.u32 %s51, 1
        %s190 = smul.addr %s189, 4
        %s191 = scalar_lea.vmem [#allocation5], %s190
        // Predicated region
        $region29: #{tpu_custom_call.1} parent=27 // pred_check
          %p192 = pneg %p64
        $region30: #{tpu_custom_call.1} parent=27 // pred_check_branch
          %194 = sbr.rel (%p192) target = $region32
        $region31: #{tpu_custom_call.1} parent=27 // pred_region
          %195 = dma.done %s188, 64
        $region32: #{tpu_custom_call.1} parent=27 // pred_fallthru
          _
        %s196 = sand.u32 %s79, 1
        %s197 = scalar_lea.sflag [#allocation9], %s196
        %s198 = sand.u32 %s79, 1
        %s199 = smul.addr %s198, 8
        %s200 = scalar_lea.vmem [#allocation8], %s199
        // Predicated region
        $region33: #{tpu_custom_call.1} parent=27 // pred_check
          %p201 = pneg %p92
        $region34: #{tpu_custom_call.1} parent=27 // pred_check_branch
          %203 = sbr.rel (%p201) target = $region36
        $region35: #{tpu_custom_call.1} parent=27 // pred_region
          %204 = dma.done %s197, 128
        $region36: #{tpu_custom_call.1} parent=27 // pred_fallthru
          _
        %s205 = sand.u32 %s51, 1
        %s206 = scalar_lea.sflag [#allocation6], %s205
        %s207 = sand.u32 %s51, 1
        %s208 = smul.addr %s207, 4
        %s209 = scalar_lea.vmem [#allocation5], %s208
        %p210 = pneg %p64
        %p211 = pneg %p61
        %s212 = sand.u32 %s79, 1
        %s213 = scalar_lea.sflag [#allocation9], %s212
        %s214 = sand.u32 %s79, 1
        %s215 = smul.addr %s214, 8
        %s216 = scalar_lea.vmem [#allocation8], %s215
        %p217 = pneg %p92
        %p218 = pneg %p89
        %p219 = pneg %p120
        %p220 = pneg %p117
        %s221 = sand.u32 %s107, 1
        %s222 = scalar_lea.sflag [#allocation7], %s221
        %s223 = sand.u32 %s107, 1
        %s224 = smul.addr %s223, 4
        %s225 = scalar_lea.vmem [#allocation10], %s224
        %p228 = scmp.eq.s32.totalorder %s29, 0
        // Predicated region
        $region37: #{tpu_custom_call.1} parent=27 // pred_check
          %p229 = pneg %p228
        $region38: #{tpu_custom_call.1} parent=27 // pred_check_branch
          %231 = sbr.rel (%p229) target = $region40
        $region39: #{tpu_custom_call.1} parent=27 // pred_region
          %232 = vst [vmem:[#allocation2] sm:$0xff] -inf
          %233 = vst [vmem:[#allocation3] sm:$0xff] 0.0
          %vm234 = vcmask 261120
          %235 = vst.msk [vmem:[#allocation4] sm:$0xff] %vm234, 0.0
        $region40: #{tpu_custom_call.1} parent=27 // pred_fallthru
          _
        %v236 = vld [vmem:[%s191] sm:$0xf]
        %v237 = vmul.bf16 %v236, 1043676725
        %v238 = vld [vmem:[%s200] sm:$0xf]
        %s239 = scalar_lea.vmem %s200, 4 [#allocation8]
        %v240 = vld [vmem:[%s239] sm:$0xf]
        %vm241 = vcmask 261120
        %v243 = vsel %vm241, %v237, 0
        %v246 = vsel %vm241, %v238, 0
        %248 = vmatprep.subr.bf16.mxu0 0
        %249 = vmatpush1.bf16.xpose.msra.mxu0 %v246
        %250 = vmatprep.subr.bf16.mxu0 0
        %251 = vmatpush1.bf16.xpose.msra.mxu0 0
        %252 = vmatprep.subr.bf16.mxu0 0
        %253 = vmatpush1.bf16.xpose.msra.mxu0 0
        %254 = vmatprep.subr.bf16.mxu0 0
        %255 = vmatpush1.bf16.xpose.msra.mxu0 0
        %256 = vmatprep.subr.bf16.mxu0 0
        %257 = vmatpush1.bf16.xpose.msra.mxu0 0
        %258 = vmatprep.subr.bf16.mxu0 0
        %259 = vmatpush1.bf16.xpose.msra.mxu0 0
        %260 = vmatprep.subr.bf16.mxu0 0
        %261 = vmatpush1.bf16.xpose.msra.mxu0 0
        %262 = vmatprep.subr.bf16.mxu0 0
        %263 = vmatpush1.bf16.xpose.msra.mxu0 0
        %264 = vmatprep.subr.bf16.mxu0 0
        %265 = vmatpush1.bf16.xpose.msra.mxu0 0
        %266 = vmatprep.subr.bf16.mxu0 0
        %267 = vmatpush1.bf16.xpose.msra.mxu0 0
        %268 = vmatprep.subr.bf16.mxu0 0
        %269 = vmatpush1.bf16.xpose.msra.mxu0 0
        %270 = vmatprep.subr.bf16.mxu0 0
        %271 = vmatpush1.bf16.xpose.msra.mxu0 0
        %272 = vmatprep.subr.bf16.mxu0 0
        %273 = vmatpush1.bf16.xpose.msra.mxu0 0
        %274 = vmatprep.subr.bf16.mxu0 0
        %275 = vmatpush1.bf16.xpose.msra.mxu0 0
        %276 = vmatprep.subr.bf16.mxu0 0
        %277 = vmatpush1.bf16.xpose.msra.mxu0 0
        %278 = vmatprep.subr.bf16.mxu0 0
        %279 = vmatpush1.bf16.xpose.msra.mxu0 0
        %280 = vmatprep.mubr.bf16.mxu0 0
        %281 = vmatmul.mubr.bf16.gmra.mrb[0].mxu0 %v243
        %v282 = vpop.f32.mrb[0].mxu0
        %v283 = vadd.f32 0.0, %v282
        %v284 = vpop.f32.mrb[0].mxu0
        %v285 = vpop.f32.mrb[0].mxu0
        %v286 = vpop.f32.mrb[0].mxu0
        %287 = vdwg.mxu0
        %v288 = vld [vmem:[#allocation2] sm:$0xff]
        %v289 = vld [vmem:[#allocation3] sm:$0xff]
        %vm290 = vcmask 64512
        %v291 = vsel %vm290, %v283, -inf
        %292 = vmax.xlane.f32.xlu0 %v291
        %v293 = vpop.xlane.xlu0 %292
        %v294 = vmax.f32 %v288, %v293
        %v295 = vsub.f32 %v288, %v294
        %v296 = vmul.f32 %v295, 1.442695
        %v297 = vpow.pop %v296
        %299 = vset.pattern.permute.xlu0 0
        %300 = vperm.xlu0 %299, %v294
        %v301 = vpop.permute.xlu0 %300
        %v303 = vsub.f32 %v283, %v301
        %v304 = vmul.f32 %v303, 1.442695
        %v305 = vpow.pop %v304
        %v306 = vmul.f32 %v297, %v289
        %v307 = vsel %vm290, %v305, 0.0
        %308 = vadd.xlane.f32.xlu0 %v307
        %v309 = vpop.xlane.xlu0 %308
        %v310 = vadd.f32 %v306, %v309
        %311 = vst [vmem:[#allocation3] sm:$0xff] %v310
        %v312 = vld [vmem:[#allocation4] sm:$0xff]
        %314 = vset.pattern.permute.xlu0 0
        %315 = vperm.xlu0 %314, %v297
        %v316 = vpop.permute.xlu0 %315
        %v318 = vmul.f32 %v312, %v316
        %v319 = vpack.c.bf16 %v305, %v305
        %v321 = vsel %vm290, %v319, 0
        %vm323 = vcmask 1043456
        %v325 = vsel %vm323, %v240, 0
        %327 = vmatprep.subr.bf16.mxu0 0
        %328 = vmatpush1.bf16.msra.mxu0 %v325
        %329 = vmatprep.subr.bf16.mxu0 0
        %330 = vmatpush1.bf16.msra.mxu0 0
        %331 = vmatprep.subr.bf16.mxu0 0
        %332 = vmatpush1.bf16.msra.mxu0 0
        %333 = vmatprep.subr.bf16.mxu0 0
        %334 = vmatpush1.bf16.msra.mxu0 0
        %335 = vmatprep.subr.bf16.mxu0 0
        %336 = vmatpush1.bf16.msra.mxu0 0
        %337 = vmatprep.subr.bf16.mxu0 0
        %338 = vmatpush1.bf16.msra.mxu0 0
        %339 = vmatprep.subr.bf16.mxu0 0
        %340 = vmatpush1.bf16.msra.mxu0 0
        %341 = vmatprep.subr.bf16.mxu0 0
        %342 = vmatpush1.bf16.msra.mxu0 0
        %343 = vmatprep.subr.bf16.mxu0 0
        %344 = vmatpush1.bf16.msra.mxu0 0
        %345 = vmatprep.subr.bf16.mxu0 0
        %346 = vmatpush1.bf16.msra.mxu0 0
        %347 = vmatprep.subr.bf16.mxu0 0
        %348 = vmatpush1.bf16.msra.mxu0 0
        %349 = vmatprep.subr.bf16.mxu0 0
        %350 = vmatpush1.bf16.msra.mxu0 0
        %351 = vmatprep.subr.bf16.mxu0 0
        %352 = vmatpush1.bf16.msra.mxu0 0
        %353 = vmatprep.subr.bf16.mxu0 0
        %354 = vmatpush1.bf16.msra.mxu0 0
        %355 = vmatprep.subr.bf16.mxu0 0
        %356 = vmatpush1.bf16.msra.mxu0 0
        %357 = vmatprep.subr.bf16.mxu0 0
        %358 = vmatpush1.bf16.msra.mxu0 0
        %359 = vmatprep.mubr.bf16.mxu0 0
        %360 = vmatmul.mubr.bf16.gmra.mrb[0].mxu0 %v321
        %v361 = vpop.f32.mrb[0].mxu0
        %v362 = vadd.f32 0.0, %v361
        %v363 = vpop.f32.mrb[0].mxu0
        %v364 = vpop.f32.mrb[0].mxu0
        %v365 = vpop.f32.mrb[0].mxu0
        %366 = vdwg.mxu0
        %v367 = vadd.f32 %v318, %v362
        %368 = vst.msk [vmem:[#allocation4] sm:$0xff] %vm241, %v367
        %369 = vst [vmem:[#allocation2] sm:$0xff] %v294
        // Predicated region
        $region41: #{tpu_custom_call.1} parent=27 // pred_check
          %p370 = pneg %p228
        $region42: #{tpu_custom_call.1} parent=27 // pred_check_branch
          %372 = sbr.rel (%p370) target = $region44
        $region43: #{tpu_custom_call.1} parent=27 // pred_region
          %v373 = vld [vmem:[#allocation3] sm:$0xff]
          %v374 = vrcp.pop %v373
          %v375 = vld [vmem:[#allocation4] sm:$0xff]
          %377 = vset.pattern.permute.xlu0 0
          %378 = vperm.xlu0 %377, %v374
          %v379 = vpop.permute.xlu0 %378
          %v381 = vmul.f32 %v375, %v379
          %v382 = vpack.c.bf16 %v381, %v381
          %vm383 = vcmask 257024
          %384 = vst.msk [vmem:[%s225] sm:$0xf] %vm383, %v382
        $region44: #{tpu_custom_call.1} parent=27 // pred_fallthru
          _
        %s385 = sand.u32 %s107, 1
        %s386 = scalar_lea.sflag [#allocation7], %s385
        %s387 = sand.u32 %s107, 1
        %s388 = smul.addr %s387, 4
        %s389 = scalar_lea.vmem [#allocation10], %s388
        // Predicated region
        $region45: #{tpu_custom_call.1} parent=27 // pred_check
          %p390 = pneg %p117
        $region46: #{tpu_custom_call.1} parent=27 // pred_check_branch
          %392 = sbr.rel (%p390) target = $region48
        $region47: #{tpu_custom_call.1} parent=27 // pred_region
          %s394 = ssub.s32 64, 64
          %395 = vsyncadd %s386, %s394
          %s396 = sadd.s32 %s28, %s27
          %s397 = smul.addr %s396, 64
          %s398 = scalar_lea.hbm %s2, %s397
          %s400 = sshll.u32 %s389, 4
          %s401 = int_to_ptr.vmem [resolvable:$true] %s400
          %403 = dma.vmem_to_hbm [thread:$0]  %s401, 64, %s398, %s386
        $region48: #{tpu_custom_call.1} parent=27 // pred_fallthru
          _
      $region28: #{tpu_custom_call.1} parent=5 // pred_fallthru
        _
      %p404 = scmp.le.s32.totalorder 2, %s17
      // Predicated region
      $region49: #{tpu_custom_call.1} parent=5 // pred_check
        %p405 = pneg %p404
      $region50: #{tpu_custom_call.1} parent=5 // pred_check_branch
        %407 = sbr.rel (%p405) target = $region52
      $region51: #{tpu_custom_call.1} parent=5 // pred_region
        %s408 = ssub.s32 %s17, 2
        // Predicated region
        $region53: #{tpu_custom_call.1} parent=51 // pred_check
          %p409 = pneg %p123
        $region54: #{tpu_custom_call.1} parent=51 // pred_check_branch
          %411 = sbr.rel (%p409) target = $region56
        $region55: #{tpu_custom_call.1} parent=51 // pred_region
          %s412 = sand.u32 %s108, 1
          %s413 = scalar_lea.sflag [#allocation7], %s412
          %s414 = sand.u32 %s108, 1
          %s415 = smul.addr %s414, 4
          %s416 = scalar_lea.vmem [#allocation10], %s415
          %417 = dma.done %s413, 64
        $region56: #{tpu_custom_call.1} parent=51 // pred_fallthru
          _
      $region52: #{tpu_custom_call.1} parent=5 // pred_fallthru
        _
    $region6: #{tpu_custom_call.1} parent=1 // loop_footer
      %s21 = sadd.s32 1, %s17
    $region7: #{tpu_custom_call.1} parent=1 // loop_footer_branch
      %16 = sbr.rel target = $region3
    $region8: #{tpu_custom_call.1} parent=1 // loop_exit
      _
    %418 = vsyncpa [#allocation6], 1
    %s419 = scalar_lea.sflag [#allocation6], 1
    %420 = vsyncpa %s419, 1
    %421 = vsyncpa [#allocation9], 1
    %s422 = scalar_lea.sflag [#allocation9], 1
    %423 = vsyncpa %s422, 1
    %424 = vsyncpa [#allocation7], 1
    %s425 = scalar_lea.sflag [#allocation7], 1
    %426 = vsyncpa %s425, 1

</llo_original>
